<compile_context>
chip_gen: v7x
topology: tpu7x:2x2x1
jax: 0.10.0
libtpu: 0.0.40
codegen_flags: <defaults>
</compile_context>

<pallas_src>
import functools

import jax
import jax.numpy as jnp
from jax.experimental import pallas as pl
from jax.experimental.pallas import tpu as pltpu

_EPS = 1e-20


def _ce_kernel(x_ref, t_ref, out_ref, loss_acc, cnt_acc, *, ignore_index: int):
    """One (batch, spatial-tile) grid step.

    x_ref:    (1, C, THW)  logits tile (class on sublanes, spatial on lanes)
    t_ref:    (1, 1, THW)  int32 target class per spatial position
    out_ref:  (1, 1, 128)  per-batch result row; lane 0 = sum(loss),
                           lane 1 = count of non-ignored pixels
    loss_acc: (1, THW) f32 per-lane partial loss sums   (VMEM scratch)
    cnt_acc:  (1, THW) f32 per-lane valid-pixel counts  (VMEM scratch)
    """
    s = pl.program_id(1)

    @pl.when(s == 0)
    def _init():
        loss_acc[...] = jnp.zeros_like(loss_acc)
        cnt_acc[...] = jnp.zeros_like(cnt_acc)

    x = x_ref[0].astype(jnp.float32)          # (C, THW) — upcast in-register
    t = t_ref[0]                              # (1, THW) int32
    c, thw = x.shape

    # Stable softmax over the class (sublane) axis.
    col_max = jnp.max(x, axis=0, keepdims=True)            # (1, THW)  XLU
    e = jnp.exp(x - col_max)                                # (C, THW)  EUP
    denom = jnp.sum(e, axis=0, keepdims=True)               # (1, THW)  XLU

    # Gather exp(x_target - max) via a one-hot select over the class axis
    # (no dynamic sublane gather on TPU); reuses `e`, so no second exp.
    class_iota = jax.lax.broadcasted_iota(jnp.int32, (c, thw), 0)
    tgt_e = jnp.sum(jnp.where(class_iota == t, e, 0.0), axis=0, keepdims=True)

    # Per-lane (O(THW)) epilogue: matches torch's  -log(softmax + 1e-20).
    p_t = tgt_e / denom                                     # target prob
    loss_lane = -jnp.log(p_t + _EPS)                        # (1, THW)

    validf = (t != ignore_index).astype(jnp.float32)        # (1, THW)
    loss_acc[...] += loss_lane * validf
    cnt_acc[...] += validf

    # Cross-lane reduction + lane scatter only once per batch row.
    @pl.when(s == pl.num_programs(1) - 1)
    def _flush():
        loss_sum = jnp.sum(loss_acc[...])
        cnt_sum = jnp.sum(cnt_acc[...])
        lane = jax.lax.broadcasted_iota(jnp.int32, out_ref.shape, 2)
        out_ref[...] = jnp.where(
            lane == 0, loss_sum,
            jnp.where(lane == 1, cnt_sum, 0.0)).astype(jnp.float32)


def cross_entropy_loss(inputs, targets, *, reduction: str = "mean",
                       ignore_index: int = -100, tile_hw: int = 8192):
    """inputs: (B, C, H, W) logits (NCHW, f32 or bf16); targets: (B, H, W) int."""
    B, C, H, W = inputs.shape
    HW = H * W

    # Native-layout reshape (free): class stays on sublanes, spatial on lanes.
    logits = inputs.reshape(B, C, HW)
    tgt = targets.reshape(B, 1, HW).astype(jnp.int32)

    itemsize = jnp.dtype(logits.dtype).itemsize
    # Lane tile: multiple of 128, no bigger than the (rounded-up) spatial
    # extent, and capped so a double-buffered logits tile stays well inside
    # the v7x VMEM budget (64 MiB physical there vs 128 MiB on v5e/v6e).
    max_thw_for_vmem = max(128, ((8 * 2**20) // (C * itemsize)) // 128 * 128)
    t_hw = max(128, (min(tile_hw, max_thw_for_vmem) // 128) * 128)
    t_hw = min(t_hw, pl.cdiv(HW, 128) * 128)

    # Pad the spatial axis to a multiple of the tile; padded targets get
    # ignore_index so they contribute neither loss nor count.
    HW_pad = pl.cdiv(HW, t_hw) * t_hw
    if HW_pad != HW:
        logits = jnp.pad(logits, ((0, 0), (0, 0), (0, HW_pad - HW)))
        tgt = jnp.pad(tgt, ((0, 0), (0, 0), (0, HW_pad - HW)),
                      constant_values=ignore_index)

    grid = (B, HW_pad // t_hw)
    kernel = functools.partial(_ce_kernel, ignore_index=int(ignore_index))

    # Double-buffered logits + targets tiles, two per-lane scratch rows
    # (sublane-padded to 8), and the tiny output row.
    bytes_per_step = 2 * (C * t_hw * itemsize + t_hw * 4) + 2 * 8 * t_hw * 4
    vmem_limit = int(min(48 * 2**20, max(32 * 2**20, 2 * bytes_per_step)))

    # TODO(synk): for very large class counts, tile C with an online max/sum
    # (flash-style) inner grid axis instead of loading the full (C, THW) block.
    sums = pl.pallas_call(
        kernel,
        out_shape=jax.ShapeDtypeStruct((B, 1, 128), jnp.float32),
        grid_spec=pltpu.PrefetchScalarGridSpec(
            num_scalar_prefetch=0,
            grid=grid,
            in_specs=[
                pl.BlockSpec((1, C, t_hw), lambda b, s: (b, 0, s)),
                pl.BlockSpec((1, 1, t_hw), lambda b, s: (b, 0, s)),
            ],
            out_specs=pl.BlockSpec((1, 1, 128), lambda b, s: (b, 0, 0)),
            scratch_shapes=[
                pltpu.VMEM((1, t_hw), jnp.float32),
                pltpu.VMEM((1, t_hw), jnp.float32),
            ],
        ),
        compiler_params=pltpu.CompilerParams(
            # Batch axis shards across TensorCores (v7x megacore); the spatial
            # tile axis is the reduction axis.
            dimension_semantics=("parallel", "arbitrary"),
            vmem_limit_bytes=vmem_limit,
        ),
    )(logits, tgt)

    loss_sum = jnp.sum(sums[:, 0, 0])
    valid_cnt = jnp.sum(sums[:, 0, 1])

    if reduction == "mean":
        return loss_sum / valid_cnt
    if reduction == "sum":
        return loss_sum
    # TODO(synk): reduction='none' (per-pixel loss map output) not implemented.
    raise NotImplementedError(f"reduction={reduction!r}")


def _reference_loss(inputs, targets, ignore_index=-100):
    """Pure-JAX reference mirroring the PyTorch module."""
    B, C, H, W = inputs.shape
    logits = jnp.transpose(inputs, (0, 2, 3, 1)).reshape(-1, C).astype(jnp.float32)
    t = targets.reshape(-1)
    logp = jnp.log(jax.nn.softmax(logits, axis=-1) + _EPS)
    picked = jnp.take_along_axis(logp, jnp.clip(t, 0, C - 1)[:, None], axis=-1)[:, 0]
    valid = t != ignore_index
    return -jnp.sum(jnp.where(valid, picked, 0.0)) / jnp.sum(valid)


if __name__ == "__main__":
    key = jax.random.PRNGKey(0)
    kx, kt = jax.random.split(key)

    B, C, H, W = 2, 4, 16, 16
    x = jax.random.normal(kx, (B, C, H, W), dtype=jnp.float32) * 5.0
    targets = jax.random.randint(kt, (B, H, W), 0, C, dtype=jnp.int32)

    loss = cross_entropy_loss(x, targets)
    loss = jax.block_until_ready(loss)

    ref = _reference_loss(x, targets)
    assert jnp.allclose(loss, ref, rtol=1e-5, atol=1e-5), (loss, ref)

    print("KERNEL_OK")
</pallas_src>

<mosaic_0001>
module attributes {stable_mosaic.version = 11 : i64} {
  func.func @_ce_kernel(%arg0: i32, %arg1: i32, %arg2: memref<1x4x256xf32, #tpu.memory_space<vmem>>, %arg3: memref<1x1x256xi32, #tpu.memory_space<vmem>>, %arg4: memref<1x1x128xf32, #tpu.memory_space<vmem>>, %arg5: memref<1x256xf32, #tpu.memory_space<vmem>>, %arg6: memref<1x256xf32, #tpu.memory_space<vmem>>) attributes {dimension_semantics = [#tpu.dimension_semantics<parallel>, #tpu.dimension_semantics<arbitrary>], iteration_bounds = array<i64: 2, 1>, scalar_prefetch = 0 : i64, scratch_operands = 2 : i64, tpu.core_type = #tpu.core_type<tc>, window_params = [{transform_indices = @transform_0, window_bounds = array<i64: 1, 4, 256>}, {transform_indices = @transform_1, window_bounds = array<i64: 1, 1, 256>}, {transform_indices = @transform_2, window_bounds = array<i64: 1, 1, 128>}]} {
    %c0_i32 = arith.constant 0 : i32
    %0 = arith.cmpi eq, %arg1, %c0_i32 : i32
    %1 = arith.extui %0 : i1 to i32
    %c0_i32_0 = arith.constant 0 : i32
    %2 = arith.cmpi ne, %1, %c0_i32_0 : i32
    scf.if %2 {
      %cst_21 = arith.constant 0.000000e+00 : f32
      %41 = vector.broadcast %cst_21 : f32 to vector<1x256xf32>
      %c0_22 = arith.constant 0 : index
      %c0_23 = arith.constant 0 : index
      %42 = vector.load %arg5[%c0_22, %c0_23] : memref<1x256xf32, #tpu.memory_space<vmem>>, vector<1x256xf32>
      tpu.vector_store %arg5[%c0_22, %c0_23], %41 {strides = array<i32>} : memref<1x256xf32, #tpu.memory_space<vmem>>, vector<1x256xf32>,
      %cst_24 = arith.constant 0.000000e+00 : f32
      %43 = vector.broadcast %cst_24 : f32 to vector<1x256xf32>
      %c0_25 = arith.constant 0 : index
      %c0_26 = arith.constant 0 : index
      %44 = vector.load %arg6[%c0_25, %c0_26] : memref<1x256xf32, #tpu.memory_space<vmem>>, vector<1x256xf32>
      tpu.vector_store %arg6[%c0_25, %c0_26], %43 {strides = array<i32>} : memref<1x256xf32, #tpu.memory_space<vmem>>, vector<1x256xf32>,
    } else {
    }
    %c0 = arith.constant 0 : index
    %c0_1 = arith.constant 0 : index
    %c0_2 = arith.constant 0 : index
    %3 = vector.load %arg2[%c0, %c0_1, %c0_2] : memref<1x4x256xf32, #tpu.memory_space<vmem>>, vector<1x4x256xf32>
    %4 = vector.shape_cast %3 : vector<1x4x256xf32> to vector<4x256xf32>
    %c0_3 = arith.constant 0 : index
    %c0_4 = arith.constant 0 : index
    %c0_5 = arith.constant 0 : index
    %5 = vector.load %arg3[%c0_3, %c0_4, %c0_5] : memref<1x1x256xi32, #tpu.memory_space<vmem>>, vector<1x1x256xi32>
    %6 = vector.shape_cast %5 : vector<1x1x256xi32> to vector<1x256xi32>
    %cst = arith.constant dense<0xFF800000> : vector<256xf32>
    %7 = vector.multi_reduction <maximumf>, %4, %cst [0] : vector<4x256xf32> to vector<256xf32>
    %8 = vector.shape_cast %7 : vector<256xf32> to vector<1x256xf32>
    %9 = vector.broadcast %8 : vector<1x256xf32> to vector<4x256xf32>
    %10 = arith.subf %4, %9 : vector<4x256xf32>
    %11 = math.exp %10 : vector<4x256xf32>
    %cst_6 = arith.constant dense<0.000000e+00> : vector<256xf32>
    %12 = vector.multi_reduction <add>, %11, %cst_6 [0] : vector<4x256xf32> to vector<256xf32>
    %13 = vector.shape_cast %12 : vector<256xf32> to vector<1x256xf32>
    %14 = tpu.iota {dimensions = array<i32: 0>} : vector<4x256xi32>
    %15 = vector.broadcast %6 : vector<1x256xi32> to vector<4x256xi32>
    %16 = arith.cmpi eq, %14, %15 : vector<4x256xi32>
    %cst_7 = arith.constant 0.000000e+00 : f32
    %17 = vector.broadcast %cst_7 : f32 to vector<4x256xf32>
    %18 = arith.select %16, %11, %17 : vector<4x256xi1>, vector<4x256xf32>
    %cst_8 = arith.constant dense<0.000000e+00> : vector<256xf32>
    %19 = vector.multi_reduction <add>, %18, %cst_8 [0] : vector<4x256xf32> to vector<256xf32>
    %20 = vector.shape_cast %19 : vector<256xf32> to vector<1x256xf32>
    %21 = arith.divf %20, %13 : vector<1x256xf32>
    %cst_9 = arith.constant 9.99999968E-21 : f32
    %22 = vector.broadcast %cst_9 : f32 to vector<1x256xf32>
    %23 = arith.addf %21, %22 : vector<1x256xf32>
    %24 = math.log %23 : vector<1x256xf32>
    %cst_10 = arith.constant 0.000000e+00 : f32
    %25 = vector.broadcast %cst_10 : f32 to vector<1x256xf32>
    %26 = arith.subf %25, %24 : vector<1x256xf32>
    %c-100_i32 = arith.constant -100 : i32
    %27 = vector.broadcast %c-100_i32 : i32 to vector<1x256xi32>
    %28 = arith.cmpi ne, %6, %27 : vector<1x256xi32>
    %29 = arith.extui %28 : vector<1x256xi1> to vector<1x256xi32>
    %30 = arith.sitofp %29 : vector<1x256xi32> to vector<1x256xf32>
    %c0_11 = arith.constant 0 : index
    %c0_12 = arith.constant 0 : index
    %31 = vector.load %arg5[%c0_11, %c0_12] : memref<1x256xf32, #tpu.memory_space<vmem>>, vector<1x256xf32>
    %32 = arith.mulf %26, %30 : vector<1x256xf32>
    %33 = arith.addf %31, %32 : vector<1x256xf32>
    %c0_13 = arith.constant 0 : index
    %c0_14 = arith.constant 0 : index
    %34 = vector.load %arg5[%c0_13, %c0_14] : memref<1x256xf32, #tpu.memory_space<vmem>>, vector<1x256xf32>
    tpu.vector_store %arg5[%c0_13, %c0_14], %33 {strides = array<i32>} : memref<1x256xf32, #tpu.memory_space<vmem>>, vector<1x256xf32>,
    %c0_15 = arith.constant 0 : index
    %c0_16 = arith.constant 0 : index
    %35 = vector.load %arg6[%c0_15, %c0_16] : memref<1x256xf32, #tpu.memory_space<vmem>>, vector<1x256xf32>
    %36 = arith.addf %35, %30 : vector<1x256xf32>
    %c0_17 = arith.constant 0 : index
    %c0_18 = arith.constant 0 : index
    %37 = vector.load %arg6[%c0_17, %c0_18] : memref<1x256xf32, #tpu.memory_space<vmem>>, vector<1x256xf32>
    tpu.vector_store %arg6[%c0_17, %c0_18], %36 {strides = array<i32>} : memref<1x256xf32, #tpu.memory_space<vmem>>, vector<1x256xf32>,
    %c0_i32_19 = arith.constant 0 : i32
    %38 = arith.cmpi eq, %arg1, %c0_i32_19 : i32
    %39 = arith.extui %38 : i1 to i32
    %c0_i32_20 = arith.constant 0 : i32
    %40 = arith.cmpi ne, %39, %c0_i32_20 : i32
    scf.if %40 {
      %c0_21 = arith.constant 0 : index
      %c0_22 = arith.constant 0 : index
      %41 = vector.load %arg5[%c0_21, %c0_22] : memref<1x256xf32, #tpu.memory_space<vmem>>, vector<1x256xf32>
      %42 = vector.shape_cast %41 : vector<1x256xf32> to vector<1x1x256xf32>
      %cst_23 = arith.constant dense<0.000000e+00> : vector<1xf32>
      %43 = vector.multi_reduction <add>, %42, %cst_23 [1, 2] : vector<1x1x256xf32> to vector<1xf32>
      %44 = vector.shape_cast %43 : vector<1xf32> to vector<1x1x1xf32>
      %45 = vector.extract %44[0, 0, 0] : f32 from vector<1x1x1xf32>
      %c0_24 = arith.constant 0 : index
      %c0_25 = arith.constant 0 : index
      %46 = vector.load %arg6[%c0_24, %c0_25] : memref<1x256xf32, #tpu.memory_space<vmem>>, vector<1x256xf32>
      %47 = vector.shape_cast %46 : vector<1x256xf32> to vector<1x1x256xf32>
      %cst_26 = arith.constant dense<0.000000e+00> : vector<1xf32>
      %48 = vector.multi_reduction <add>, %47, %cst_26 [1, 2] : vector<1x1x256xf32> to vector<1xf32>
      %49 = vector.shape_cast %48 : vector<1xf32> to vector<1x1x1xf32>
      %50 = vector.extract %49[0, 0, 0] : f32 from vector<1x1x1xf32>
      %51 = tpu.iota {dimensions = array<i32: 2>} : vector<1x1x128xi32>
      %c0_i32_27 = arith.constant 0 : i32
      %52 = vector.broadcast %c0_i32_27 : i32 to vector<1x1x128xi32>
      %53 = arith.cmpi eq, %51, %52 : vector<1x1x128xi32>
      %c1_i32 = arith.constant 1 : i32
      %54 = vector.broadcast %c1_i32 : i32 to vector<1x1x128xi32>
      %55 = arith.cmpi eq, %51, %54 : vector<1x1x128xi32>
      %cst_28 = arith.constant 0.000000e+00 : f32
      %56 = vector.broadcast %50 : f32 to vector<1x1x128xf32>
      %57 = vector.broadcast %cst_28 : f32 to vector<1x1x128xf32>
      %58 = arith.select %55, %56, %57 : vector<1x1x128xi1>, vector<1x1x128xf32>
      %59 = vector.broadcast %45 : f32 to vector<1x1x128xf32>
      %60 = arith.select %53, %59, %58 : vector<1x1x128xi1>, vector<1x1x128xf32>
      %c0_29 = arith.constant 0 : index
      %c0_30 = arith.constant 0 : index
      %c0_31 = arith.constant 0 : index
      %61 = vector.load %arg4[%c0_29, %c0_30, %c0_31] : memref<1x1x128xf32, #tpu.memory_space<vmem>>, vector<1x1x128xf32>
      tpu.vector_store %arg4[%c0_29, %c0_30, %c0_31], %60 {strides = array<i32>} : memref<1x1x128xf32, #tpu.memory_space<vmem>>, vector<1x1x128xf32>,
    } else {
    }
    return
  }
  func.func @transform_0(%arg0: i32, %arg1: i32) -> (i32, i32, i32) {
    %c0_i32 = arith.constant 0 : i32
    %c0_i32_0 = arith.constant 0 : i32
    return %arg0, %c0_i32, %arg1 : i32, i32, i32
  }
  func.func @transform_1(%arg0: i32, %arg1: i32) -> (i32, i32, i32) {
    %c0_i32 = arith.constant 0 : i32
    %c0_i32_0 = arith.constant 0 : i32
    return %arg0, %c0_i32, %arg1 : i32, i32, i32
  }
  func.func @transform_2(%arg0: i32, %arg1: i32) -> (i32, i32, i32) {
    %c0_i32 = arith.constant 0 : i32
    %c0_i32_0 = arith.constant 0 : i32
    %c0_i32_1 = arith.constant 0 : i32
    return %arg0, %c0_i32, %c0_i32_0 : i32, i32, i32
  }
}

</mosaic_0001>

<llo_original>
// kernel: tpu_custom_call.1
$region0: #{tpu_custom_call.1}
  #allocation0 [shape = 'u32[]', space=smem, size = 0x4, offset = 0x4, fixed_abs, tag = 'smem constant byte address 0x4 - core index']
  #allocation1 [shape = 'u32[144,128]{1,0:T(1,128)}', space=vmem, size = 0x12000, scoped, tag = 'internal scratch']
  #allocation2 [shape = 'f32[1,256]{1,0:T(1,128)}', space=vmem, size = 0x400, scoped, tag = 'scratch operand']
  #allocation3 [shape = 'f32[1,256]{1,0:T(1,128)}', space=vmem, size = 0x400, scoped, tag = 'scratch operand']
  %s0 = inlined_call_operand.hbm [shape: f32[2,4,256], index: 0, kind: input, shape index: {}]
  %s1 = inlined_call_operand.hbm [shape: s32[2,1,256], index: 1, kind: input, shape index: {}]
  %s2 = inlined_call_operand.hbm [shape: f32[2,1,128], index: 2, kind: output, shape index: {}]
  %s3 = sld [smem:[#allocation0]]
  $region57: #{tpu_custom_call.1} parent=0
    _
  %s5 = ssub.s32 1, %s3
  %s6 = scalar_select 0, %s5, %s3
  $region1: #{tpu_custom_call.1} parent=0
    #allocation4 [shape = 'u8[8192]{0}', space=vmem, size = 0x2000, scoped, tag = 'input window, operand 0']
    #allocation5 [shape = 's32[2]{0}', space=sflag, size = 0x8, scoped, tag = 'scoped memory for tpu_custom_call.1']
    #allocation6 [shape = 's32[2]{0}', space=sflag, size = 0x8, scoped, tag = 'scoped memory for tpu_custom_call.1']
    #allocation7 [shape = 'u8[2048]{0}', space=vmem, size = 0x800, scoped, tag = 'input window, operand 1']
    #allocation8 [shape = 's32[2]{0}', space=sflag, size = 0x8, scoped, tag = 'scoped memory for tpu_custom_call.1']
    #allocation9 [shape = 'u8[1024]{0}', space=vmem, size = 0x400, scoped, tag = 'output window, operand 0']
    %7 = vsyncpa [#allocation5], 0
    %s8 = scalar_lea.sflag [#allocation5], 1
    %9 = vsyncpa %s8, 0
    %10 = vsyncpa [#allocation8], 0
    %s11 = scalar_lea.sflag [#allocation8], 1
    %12 = vsyncpa %s11, 0
    %13 = vsyncpa [#allocation6], 0
    %s14 = scalar_lea.sflag [#allocation6], 1
    %15 = vsyncpa %s14, 0
    loop: start=0, step=1, limit=4
    $region2: #{tpu_custom_call.1} parent=1 // loop_pre_header
      _
    $region3: #{tpu_custom_call.1} parent=1 // loop_header
      %s17 = sphi 0, %s21
      %p18 = scmp.ge.s32.totalorder %s17, 4
      %s24 = sphi 0, %s36
      %s25 = sphi 0, %s32
      %s26 = sphi 0, %s24
      %s27 = sphi 0, %s25
      %s28 = sphi 0, %s26
      %s29 = sphi 0, %s27
      %s41 = sphi 0, %s43
      %s44 = sphi 0, %s41
      %s45 = sphi 0, %s44
      %s61 = sphi 0, %s45
      %s69 = sphi 0, %s71
      %s72 = sphi 0, %s69
      %s73 = sphi 0, %s72
      %s89 = sphi 0, %s73
      %s95 = sphi 0, %s97
      %s98 = sphi 0, %s95
      %s99 = sphi 0, %s98
      %s115 = sphi 0, %s99
    $region4: #{tpu_custom_call.1} parent=1 // loop_header_branch
      %20 = sbr.rel (%p18) target = $region8
    $region5: #{tpu_custom_call.1} parent=1 // loop_body
      %s22 = ssub.s32 %s17, 1
      %s23 = ssub.s32 %s17, 2
      %s30 = sadd.s32 1, %s25
      %p31 = scmp.ge.s32.totalorder %s30, 1
      %s32 = scalar_select %p31, 0, %s30
      %s33 = sadd.s32 1, %s24
      %s34 = scalar_select %p31, %s33, %s24
      %p35 = scmp.ge.s32.totalorder %s34, 2
      %s36 = scalar_select %p35, 0, %s34
      %s37 = ssub.s32 %s24, %s36
      %s38 = ssub.s32 %s25, %s32
      %s39 = sor.u32 %s37, %s38
      %p40 = scmp.eq.s32.totalorder %s39, 0
      %s42 = sadd.s32 %s41, 1
      %s43 = scalar_select %p40, %s41, %s42
      %p46 = pneg %p40
      %p47 = scmp.eq.s32.totalorder %s17, 1
      %p48 = por %p46, %p47
      %p49 = scmp.ne.s32.totalorder %s41, %s44
      %p50 = scmp.eq.s32.totalorder %s17, 0
      %p51 = por %p49, %p50
      %p52 = scmp.ne.s32.totalorder %s41, %s44
      %p53 = scmp.eq.s32.totalorder %s22, 1
      %p54 = por %p52, %p53
      %p55 = scmp.ne.s32.totalorder %s44, %s45
      %p56 = scmp.eq.s32.totalorder %s22, 0
      %p57 = por %p55, %p56
      %p58 = scmp.ne.s32.totalorder %s44, %s45
      %p59 = scmp.eq.s32.totalorder %s23, 1
      %p60 = por %p58, %p59
      %p62 = scmp.ne.s32.totalorder %s45, %s61
      %p63 = scmp.eq.s32.totalorder %s23, 0
      %p64 = por %p62, %p63
      %s65 = ssub.s32 %s24, %s36
      %s66 = ssub.s32 %s25, %s32
      %s67 = sor.u32 %s65, %s66
      %p68 = scmp.eq.s32.totalorder %s67, 0
      %s70 = sadd.s32 %s69, 1
      %s71 = scalar_select %p68, %s69, %s70
      %p74 = pneg %p68
      %p75 = scmp.eq.s32.totalorder %s17, 1
      %p76 = por %p74, %p75
      %p77 = scmp.ne.s32.totalorder %s69, %s72
      %p78 = scmp.eq.s32.totalorder %s17, 0
      %p79 = por %p77, %p78
      %p80 = scmp.ne.s32.totalorder %s69, %s72
      %p81 = scmp.eq.s32.totalorder %s22, 1
      %p82 = por %p80, %p81
      %p83 = scmp.ne.s32.totalorder %s72, %s73
      %p84 = scmp.eq.s32.totalorder %s22, 0
      %p85 = por %p83, %p84
      %p86 = scmp.ne.s32.totalorder %s72, %s73
      %p87 = scmp.eq.s32.totalorder %s23, 1
      %p88 = por %p86, %p87
      %p90 = scmp.ne.s32.totalorder %s73, %s89
      %p91 = scmp.eq.s32.totalorder %s23, 0
      %p92 = por %p90, %p91
      %s93 = ssub.s32 %s24, %s36
      %p94 = scmp.eq.s32.totalorder %s93, 0
      %s96 = sadd.s32 %s95, 1
      %s97 = scalar_select %p94, %s95, %s96
      %p100 = pneg %p94
      %p101 = scmp.eq.s32.totalorder %s17, 1
      %p102 = por %p100, %p101
      %p103 = scmp.ne.s32.totalorder %s95, %s98
      %p104 = scmp.eq.s32.totalorder %s17, 0
      %p105 = por %p103, %p104
      %p106 = scmp.ne.s32.totalorder %s95, %s98
      %p107 = scmp.eq.s32.totalorder %s22, 1
      %p108 = por %p106, %p107
      %p109 = scmp.ne.s32.totalorder %s98, %s99
      %p110 = scmp.eq.s32.totalorder %s22, 0
      %p111 = por %p109, %p110
      %p112 = scmp.ne.s32.totalorder %s98, %s99
      %p113 = scmp.eq.s32.totalorder %s23, 1
      %p114 = por %p112, %p113
      %p116 = scmp.ne.s32.totalorder %s99, %s115
      %p117 = scmp.eq.s32.totalorder %s23, 0
      %p118 = por %p116, %p117
      %p119 = scmp.le.s32.totalorder 1, %s17
      %p120 = scmp.lt.s32.totalorder %s17, 3
      %p121 = pnand %p119, %p120
      %p122 = pneg %p121
      // Predicated region
      $region9: #{tpu_custom_call.1} parent=5 // pred_check
        _
      $region10: #{tpu_custom_call.1} parent=5 // pred_check_branch
        %124 = sbr.rel (%p121) target = $region12
      $region11: #{tpu_custom_call.1} parent=5 // pred_region
        %s125 = ssub.s32 %s17, 1
      $region12: #{tpu_custom_call.1} parent=5 // pred_fallthru
        _
      %p126 = scmp.lt.s32.totalorder %s17, 2
      // Predicated region
      $region13: #{tpu_custom_call.1} parent=5 // pred_check
        %p127 = pneg %p126
      $region14: #{tpu_custom_call.1} parent=5 // pred_check_branch
        %129 = sbr.rel (%p127) target = $region16
      $region15: #{tpu_custom_call.1} parent=5 // pred_region
        // Predicated region
        $region17: #{tpu_custom_call.1} parent=15 // pred_check
          %p130 = pneg %p51
        $region18: #{tpu_custom_call.1} parent=15 // pred_check_branch
          %132 = sbr.rel (%p130) target = $region20
        $region19: #{tpu_custom_call.1} parent=15 // pred_region
          %s133 = sand.u32 %s41, 1
          %s134 = scalar_lea.sflag [#allocation5], %s133
          %s135 = sand.u32 %s41, 1
          %s136 = smul.addr %s135, 8
          %s137 = scalar_lea.vmem [#allocation4], %s136
          %s138 = smul.u32 2, %s25
          %s140 = ssub.s32 128, 128
          %141 = vsyncadd %s134, %s140
          %s142 = smul.addr %s24, 2
          %s143 = sadd.s32 %s138, %s142
          %s144 = smul.addr %s143, 64
          %s145 = scalar_lea.hbm %s0, %s144
          %s147 = sshll.u32 %s137, 4
          %s148 = int_to_ptr.vmem [resolvable:$true] %s147
          %150 = dma.hbm_to_vmem [thread:$0]  %s145, 128, %s148, %s134
        $region20: #{tpu_custom_call.1} parent=15 // pred_fallthru
          _
        // Predicated region
        $region21: #{tpu_custom_call.1} parent=15 // pred_check
          %p151 = pneg %p79
        $region22: #{tpu_custom_call.1} parent=15 // pred_check_branch
          %153 = sbr.rel (%p151) target = $region24
        $region23: #{tpu_custom_call.1} parent=15 // pred_region
          %s154 = sand.u32 %s69, 1
          %s155 = scalar_lea.sflag [#allocation8], %s154
          %s156 = sand.u32 %s69, 1
          %s157 = smul.addr %s156, 2
          %s158 = scalar_lea.vmem [#allocation7], %s157
          %s159 = smul.u32 2, %s25
          %s161 = ssub.s32 32, 32
          %162 = vsyncadd %s155, %s161
          %s163 = smul.addr %s24, 2
          %s164 = sadd.s32 %s159, %s163
          %s165 = smul.addr %s164, 16
          %s166 = scalar_lea.hbm %s1, %s165
          %s168 = sshll.u32 %s158, 4
          %s169 = int_to_ptr.vmem [resolvable:$true] %s168
          %171 = dma.hbm_to_vmem [thread:$0]  %s166, 32, %s169, %s155
        $region24: #{tpu_custom_call.1} parent=15 // pred_fallthru
          _
      $region16: #{tpu_custom_call.1} parent=5 // pred_fallthru
        _
      %p172 = scmp.le.s32.totalorder 1, %s17
      %p173 = scmp.lt.s32.totalorder %s17, 3
      %p174 = pnand %p172, %p173
      %p175 = pneg %p174
      // Predicated region
      $region25: #{tpu_custom_call.1} parent=5 // pred_check
        _
      $region26: #{tpu_custom_call.1} parent=5 // pred_check_branch
        %177 = sbr.rel (%p174) target = $region28
      $region27: #{tpu_custom_call.1} parent=5 // pred_region
        %s178 = ssub.s32 %s17, 1
        %s179 = sand.u32 %s44, 1
        %s180 = scalar_lea.sflag [#allocation5], %s179
        %s181 = sand.u32 %s44, 1
        %s182 = smul.addr %s181, 8
        %s183 = scalar_lea.vmem [#allocation4], %s182
        // Predicated region
        $region29: #{tpu_custom_call.1} parent=27 // pred_check
          %p184 = pneg %p57
        $region30: #{tpu_custom_call.1} parent=27 // pred_check_branch
          %186 = sbr.rel (%p184) target = $region32
        $region31: #{tpu_custom_call.1} parent=27 // pred_region
          %187 = dma.done %s180, 128
        $region32: #{tpu_custom_call.1} parent=27 // pred_fallthru
          _
        %s188 = sand.u32 %s72, 1
        %s189 = scalar_lea.sflag [#allocation8], %s188
        %s190 = sand.u32 %s72, 1
        %s191 = smul.addr %s190, 2
        %s192 = scalar_lea.vmem [#allocation7], %s191
        // Predicated region
        $region33: #{tpu_custom_call.1} parent=27 // pred_check
          %p193 = pneg %p85
        $region34: #{tpu_custom_call.1} parent=27 // pred_check_branch
          %195 = sbr.rel (%p193) target = $region36
        $region35: #{tpu_custom_call.1} parent=27 // pred_region
          %196 = dma.done %s189, 32
        $region36: #{tpu_custom_call.1} parent=27 // pred_fallthru
          _
        %s197 = sand.u32 %s44, 1
        %s198 = scalar_lea.sflag [#allocation5], %s197
        %s199 = sand.u32 %s44, 1
        %s200 = smul.addr %s199, 8
        %s201 = scalar_lea.vmem [#allocation4], %s200
        %p202 = pneg %p57
        %p203 = pneg %p54
        %s204 = sand.u32 %s72, 1
        %s205 = scalar_lea.sflag [#allocation8], %s204
        %s206 = sand.u32 %s72, 1
        %s207 = smul.addr %s206, 2
        %s208 = scalar_lea.vmem [#allocation7], %s207
        %p209 = pneg %p85
        %p210 = pneg %p82
        %p211 = pneg %p111
        %p212 = pneg %p108
        %s213 = sand.u32 %s98, 1
        %s214 = scalar_lea.sflag [#allocation6], %s213
        %s215 = sand.u32 %s98, 1
        %s216 = scalar_lea.vmem [#allocation9], %s215
        %s217 = smul.u32 2, %s27
        %s218 = smul.u32 2, %s27
        %p219 = scmp.eq.s32.totalorder %s27, 0
        // Predicated region
        $region37: #{tpu_custom_call.1} parent=27 // pred_check
          %p220 = pneg %p219
        $region38: #{tpu_custom_call.1} parent=27 // pred_check_branch
          %222 = sbr.rel (%p220) target = $region40
        $region39: #{tpu_custom_call.1} parent=27 // pred_region
          %v223 = vlaneseq
          %vm224 = vcmp.ge.s32.totalorder %v223, 0
          %vm225 = vcmp.lt.s32.totalorder %v223, 256
          %vm226 = vmand %vm224, %vm225
          %227 = vst.msk [vmem:[#allocation2] sm:$0x3] %vm226, 0.0
          %228 = vst.msk [vmem:[#allocation3] sm:$0x3] %vm226, 0.0
        $region40: #{tpu_custom_call.1} parent=27 // pred_fallthru
          _
        %v229 = vld [vmem:[%s183] sm:$0xff]
        %v230 = vld [vmem:[%s192] sm:$0x3]
        %v232 = vcombine.high %v229, %v229
        %vm234 = vcmask 1043456
        %v235 = vsel %vm234, %v229, -inf
        %v236 = vrot.slane %v235, 4
        %v237 = vmax.f32 %v235, %v236
        %v238 = vrot.slane %v237, 2
        %v239 = vmax.f32 %v237, %v238
        %v240 = vrot.slane %v239, 1
        %v241 = vmax.f32 %v239, %v240
        %v242 = vsel %vm234, %v232, -inf
        %v243 = vrot.slane %v242, 4
        %v244 = vmax.f32 %v242, %v243
        %v245 = vrot.slane %v244, 2
        %v246 = vmax.f32 %v244, %v245
        %v247 = vrot.slane %v246, 1
        %v248 = vmax.f32 %v246, %v247
        %v251 = vcombine.low %v241, %v248
        %v253 = vsub.f32 %v229, %v251
        %v254 = vmul.f32 %v253, 1.442695
        %v255 = vpow.pop %v254
        %v257 = vcombine.high %v255, %v255
        %v259 = vsel %vm234, %v255, 0.0
        %v260 = vrot.slane %v259, 4
        %v261 = vadd.f32 %v259, %v260
        %v262 = vrot.slane %v261, 2
        %v263 = vadd.f32 %v261, %v262
        %v264 = vrot.slane %v263, 1
        %v265 = vadd.f32 %v263, %v264
        %v266 = vsel %vm234, %v257, 0.0
        %v267 = vrot.slane %v266, 4
        %v268 = vadd.f32 %v266, %v267
        %v269 = vrot.slane %v268, 2
        %v270 = vadd.f32 %v268, %v269
        %v271 = vrot.slane %v270, 1
        %v272 = vadd.f32 %v270, %v271
        %v273 = vlaneseq
        %v274 = vshrl.u32 %v273, 7
        %v275 = vlaneseq
        %v276 = vshrl.u32 %v275, 7
        %v277 = vsub.s32 0, %v276
        %v278 = vrot.slane %v230, %v277
        %v279 = vlaneseq
        %v280 = vshrl.u32 %v279, 7
        %v281 = vsub.s32 1, %v280
        %v282 = vrot.slane %v230, %v281
        %vm283 = vcmp.eq.s32.totalorder %v274, %v278
        %vm284 = vcmp.eq.s32.totalorder %v274, %v282
        %v285 = vsel %vm283, %v255, 0.0
        %v286 = vsel %vm284, %v257, 0.0
        %v287 = vsel %vm234, %v285, 0.0
        %v288 = vrot.slane %v287, 4
        %v289 = vadd.f32 %v287, %v288
        %v290 = vrot.slane %v289, 2
        %v291 = vadd.f32 %v289, %v290
        %v292 = vrot.slane %v291, 1
        %v293 = vadd.f32 %v291, %v292
        %v294 = vsel %vm234, %v286, 0.0
        %v295 = vrot.slane %v294, 4
        %v296 = vadd.f32 %v294, %v295
        %v297 = vrot.slane %v296, 2
        %v298 = vadd.f32 %v296, %v297
        %v299 = vrot.slane %v298, 1
        %v300 = vadd.f32 %v298, %v299
        %v301 = vrcp.pop %v265
        %v302 = vmul.f32 %v293, %v301
        %v303 = vrcp.pop %v272
        %v304 = vmul.f32 %v300, %v303
        %v305 = vadd.f32 %v302, 1e-20
        %v306 = vadd.f32 %v304, 1e-20
        %v307 = vlog2.pop %v305
        %v308 = vmul.f32 %v307, 0.6931472
        %v309 = vlog2.pop %v306
        %v310 = vmul.f32 %v309, 0.6931472
        %v311 = vsub.f32 0.0, %v308
        %v312 = vsub.f32 0.0, %v310
        %vm313 = vcmp.ne.s32.totalorder %v230, 4294967196
        %v314 = vsel %vm313, 1, 0
        %v315 = vcvt.s32.f32 %v314
        %v316 = vld [vmem:[#allocation2] sm:$0x3]
        %v318 = vlaneseq
        %v319 = vshrl.u32 %v318, 7
        %v320 = vsub.s32 0, %v319
        %v321 = vrot.slane %v315, %v320
        %v322 = vlaneseq
        %v323 = vshrl.u32 %v322, 7
        %v324 = vsub.s32 1, %v323
        %v325 = vrot.slane %v315, %v324
        %v328 = vmul.f32 %v311, %v321
        %v329 = vmul.f32 %v312, %v325
        %v332 = vcombine.low %v328, %v329
        %v334 = vunpack.c.l.s4 1966171168
        %v335 = vunpack.c.0.s8 %v334
        %v336 = vlaneseq
        %v337 = vshrl.u32 %v336, 7
        %v338 = vsub.s32 %v335, %v337
        %v339 = vrot.slane %v332, %v338
        %v341 = vunpack.c.l.s4 1966171168
        %v342 = vunpack.c.0.s8 %v341
        %v343 = vlaneseq
        %v344 = vshrl.u32 %v343, 7
        %v345 = vsub.s32 %v342, %v344
        %v346 = vrot.slane %v339, %v345
        %v348 = vadd.f32 %v316, %v346
        %v349 = vlaneseq
        %vm350 = vcmp.ge.s32.totalorder %v349, 0
        %vm351 = vcmp.lt.s32.totalorder %v349, 256
        %vm352 = vmand %vm350, %vm351
        %353 = vst.msk [vmem:[#allocation2] sm:$0x3] %vm352, %v348
        %v354 = vld [vmem:[#allocation3] sm:$0x3]
        %v355 = vadd.f32 %v354, %v315
        %356 = vst.msk [vmem:[#allocation3] sm:$0x3] %vm352, %v355
        // Predicated region
        $region41: #{tpu_custom_call.1} parent=27 // pred_check
          %p357 = pneg %p219
        $region42: #{tpu_custom_call.1} parent=27 // pred_check_branch
          %359 = sbr.rel (%p357) target = $region44
        $region43: #{tpu_custom_call.1} parent=27 // pred_region
          %v360 = vld [vmem:[#allocation2] sm:$0x3]
          %v362 = vlaneseq
          %v363 = vshrl.u32 %v362, 7
          %v364 = vsub.s32 0, %v363
          %v365 = vrot.slane %v360, %v364
          %v366 = vlaneseq
          %v367 = vshrl.u32 %v366, 7
          %v368 = vsub.s32 1, %v367
          %v369 = vrot.slane %v360, %v368
          %vm372 = vcmask 1040384
          %v373 = vsel %vm372, %v365, 0.0
          %v374 = vsel %vm372, %v369, 0.0
          %v375 = vadd.f32 %v373, %v374
          %376 = vadd.xlane.f32.xlu0 %v375
          %v377 = vpop.xlane.xlu0 %376
          %v378 = vrot.slane %v377, 4
          %v379 = vadd.f32 %v377, %v378
          %v380 = vrot.slane %v379, 2
          %v381 = vadd.f32 %v379, %v380
          %v382 = vrot.slane %v381, 1
          %v383 = vadd.f32 %v381, %v382
          %s384 = vtos %v383
          %v385 = vld [vmem:[#allocation3] sm:$0x3]
          %v387 = vlaneseq
          %v388 = vshrl.u32 %v387, 7
          %v389 = vsub.s32 0, %v388
          %v390 = vrot.slane %v385, %v389
          %v391 = vlaneseq
          %v392 = vshrl.u32 %v391, 7
          %v393 = vsub.s32 1, %v392
          %v394 = vrot.slane %v385, %v393
          %v397 = vsel %vm372, %v390, 0.0
          %v398 = vsel %vm372, %v394, 0.0
          %v399 = vadd.f32 %v397, %v398
          %400 = vadd.xlane.f32.xlu0 %v399
          %v401 = vpop.xlane.xlu0 %400
          %v402 = vrot.slane %v401, 4
          %v403 = vadd.f32 %v401, %v402
          %v404 = vrot.slane %v403, 2
          %v405 = vadd.f32 %v403, %v404
          %v406 = vrot.slane %v405, 1
          %v407 = vadd.f32 %v405, %v406
          %s408 = vtos %v407
          %v409 = vlaneseq
          %v410 = vand.u32 %v409, 127
          %vm411 = vcmp.eq.s32.totalorder %v410, 0
          %vm412 = vcmp.eq.s32.totalorder %v410, 1
          %v413 = vstv %s408
          %v414 = vsel %vm412, %v413, 0.0
          %v415 = vstv %s384
          %v416 = vsel %vm411, %v415, %v414
          %417 = vst [vmem:[%s216] sm:$0x1] %v416
        $region44: #{tpu_custom_call.1} parent=27 // pred_fallthru
          _
        %s418 = sand.u32 %s98, 1
        %s419 = scalar_lea.sflag [#allocation6], %s418
        %s420 = sand.u32 %s98, 1
        %s421 = scalar_lea.vmem [#allocation9], %s420
        // Predicated region
        $region45: #{tpu_custom_call.1} parent=27 // pred_check
          %p422 = pneg %p108
        $region46: #{tpu_custom_call.1} parent=27 // pred_check_branch
          %424 = sbr.rel (%p422) target = $region48
        $region47: #{tpu_custom_call.1} parent=27 // pred_region
          %s426 = ssub.s32 16, 16
          %427 = vsyncadd %s419, %s426
          %s428 = smul.addr %s26, 16
          %s429 = scalar_lea.hbm %s2, %s428
          %s431 = sshll.u32 %s421, 4
          %s432 = int_to_ptr.vmem [resolvable:$true] %s431
          %434 = dma.vmem_to_hbm [thread:$0]  %s432, 16, %s429, %s419
        $region48: #{tpu_custom_call.1} parent=27 // pred_fallthru
          _
      $region28: #{tpu_custom_call.1} parent=5 // pred_fallthru
        _
      %p435 = scmp.le.s32.totalorder 2, %s17
      // Predicated region
      $region49: #{tpu_custom_call.1} parent=5 // pred_check
        %p436 = pneg %p435
      $region50: #{tpu_custom_call.1} parent=5 // pred_check_branch
        %438 = sbr.rel (%p436) target = $region52
      $region51: #{tpu_custom_call.1} parent=5 // pred_region
        %s439 = ssub.s32 %s17, 2
        // Predicated region
        $region53: #{tpu_custom_call.1} parent=51 // pred_check
          %p440 = pneg %p114
        $region54: #{tpu_custom_call.1} parent=51 // pred_check_branch
          %442 = sbr.rel (%p440) target = $region56
        $region55: #{tpu_custom_call.1} parent=51 // pred_region
          %s443 = sand.u32 %s99, 1
          %s444 = scalar_lea.sflag [#allocation6], %s443
          %s445 = sand.u32 %s99, 1
          %s446 = scalar_lea.vmem [#allocation9], %s445
          %447 = dma.done %s444, 16
        $region56: #{tpu_custom_call.1} parent=51 // pred_fallthru
          _
      $region52: #{tpu_custom_call.1} parent=5 // pred_fallthru
        _
    $region6: #{tpu_custom_call.1} parent=1 // loop_footer
      %s21 = sadd.s32 1, %s17
    $region7: #{tpu_custom_call.1} parent=1 // loop_footer_branch
      %16 = sbr.rel target = $region3
    $region8: #{tpu_custom_call.1} parent=1 // loop_exit
      _
    %448 = vsyncpa [#allocation5], 1
    %s449 = scalar_lea.sflag [#allocation5], 1
    %450 = vsyncpa %s449, 1
    %451 = vsyncpa [#allocation8], 1
    %s452 = scalar_lea.sflag [#allocation8], 1
    %453 = vsyncpa %s452, 1
    %454 = vsyncpa [#allocation6], 1
    %s455 = scalar_lea.sflag [#allocation6], 1
    %456 = vsyncpa %s455, 1

</llo_original>
